<compile_context>
chip_gen: v7x
topology: tpu7x:2x2x1
jax: 0.10.0
libtpu: 0.0.40
codegen_flags: <defaults>
</compile_context>

<pallas_src>
import functools

import jax
import jax.numpy as jnp
from jax import lax
from jax.experimental import pallas as pl
from jax.experimental.pallas import tpu as pltpu

_LANES = 128


def _round_up(n, m):
    return ((n + m - 1) // m) * m


def _gelu(x, exact):
    if exact:
        # Exact GELU (matches torch.nn.GELU() default): 0.5*x*(1+erf(x/sqrt(2)))
        inv_sqrt2 = 0.7071067811865476
        return 0.5 * x * (1.0 + lax.erf(x * inv_sqrt2))
    # tanh approximation -> transcendental goes to the EUP slot.
    return jax.nn.gelu(x, approximate=True)


def _box_head_kernel(x_ref, w0_ref, b0_ref, w1_ref, b1_ref, w2_ref, b2_ref,
                     o_ref, *, compute_dtype, exact_gelu):
    # dense0 + GELU (fp32 accumulate on the MXU)
    x = x_ref[...].astype(compute_dtype)
    h = jnp.dot(x, w0_ref[...], preferred_element_type=jnp.float32)
    h = _gelu(h + b0_ref[...], exact_gelu)

    # dense1 + GELU
    h = jnp.dot(h.astype(compute_dtype), w1_ref[...],
                preferred_element_type=jnp.float32)
    h = _gelu(h + b1_ref[...], exact_gelu)

    # dense2 (lane-padded to 128 outputs) + sigmoid
    out = jnp.dot(h.astype(compute_dtype), w2_ref[...],
                  preferred_element_type=jnp.float32)
    o_ref[...] = jax.nn.sigmoid(out + b2_ref[...]).astype(o_ref.dtype)


def prepare_params(params, compute_dtype=jnp.bfloat16):
    """One-time (outside the hot path) weight prep:
    - zero-pad dense2 to 128 output lanes (lane-dense stores),
    - cast matmul weights to the MXU compute dtype (bf16 fast path / fp32 exact),
    - keep biases fp32 (added onto the fp32 accumulator)."""
    H = params["w0"].shape[0]
    out_dim = params["w2"].shape[1]
    out_pad = _round_up(max(out_dim, _LANES), _LANES)
    w2p = jnp.zeros((H, out_pad), params["w2"].dtype).at[:, :out_dim].set(
        params["w2"])
    b2p = jnp.zeros((1, out_pad), params["b2"].dtype).at[:, :out_dim].set(
        params["b2"])
    return {
        "w0": params["w0"].astype(compute_dtype),
        "b0": params["b0"].astype(jnp.float32),
        "w1": params["w1"].astype(compute_dtype),
        "b1": params["b1"].astype(jnp.float32),
        "w2": w2p.astype(compute_dtype),
        "b2": b2p.astype(jnp.float32),
        "out_dim": out_dim,  # python int, kept out of the jitted pytree
    }


@functools.partial(jax.jit, static_argnames=("out_dim", "block_rows"))
def _box_head(x, w0, b0, w1, b1, w2p, b2p, *, out_dim, block_rows):
    B, S, H = x.shape
    out_pad = w2p.shape[1]
    n_rows = B * S
    x2d = x.reshape(n_rows, H)  # contiguous reshape: no HBM copy

    # Row tile: multiple of 8, capped by the row count; shrink when necessary
    # so the grid has >= 2 programs (v7x megacore).
    br = min(_round_up(block_rows, 8), _round_up(n_rows, 8))
    while br > 8 and pl.cdiv(n_rows, br) < 2:
        br = max(8, _round_up(br // 2, 8))
    grid = (pl.cdiv(n_rows, br),)

    compute_dtype = w0.dtype
    exact_gelu = bool(compute_dtype == jnp.float32)
    kernel = functools.partial(_box_head_kernel,
                               compute_dtype=compute_dtype,
                               exact_gelu=exact_gelu)

    # VMEM budget: resident weights + double-buffered x/out tiles + intermediates.
    w_itemsize = w0.dtype.itemsize
    x_itemsize = x.dtype.itemsize
    w_bytes = ((w0.size + w1.size + w2p.size) * w_itemsize
               + (b0.size + b1.size + b2p.size) * 4)
    tile_bytes = 2 * br * H * x_itemsize + 2 * br * out_pad * 4
    interm_bytes = 4 * br * H * 4
    vmem_limit = int(max(16 << 20,
                         min(64 << 20,
                             2 * (w_bytes + tile_bytes + interm_bytes)
                             + (2 << 20))))

    cost = pl.CostEstimate(
        flops=2 * n_rows * (2 * H * H + H * out_pad),
        transcendentals=n_rows * (2 * H + out_pad),  # 2x GELU + sigmoid
        bytes_accessed=(n_rows * H * x_itemsize + w_bytes
                        + n_rows * out_pad * 4),
    )

    # Weights/biases: fully resident in VMEM, single buffer (no pipelining).
    resident = pl.BlockSpec(memory_space=pltpu.MemorySpace.VMEM)

    out2d = pl.pallas_call(
        kernel,
        out_shape=jax.ShapeDtypeStruct((n_rows, out_pad), jnp.float32),
        grid_spec=pltpu.PrefetchScalarGridSpec(
            num_scalar_prefetch=0,
            grid=grid,
            in_specs=[
                pl.BlockSpec((br, H), lambda i: (i, 0)),  # x row tile (pipelined)
                resident,                                 # w0 (H, H)
                resident,                                 # b0 (1, H)
                resident,                                 # w1 (H, H)
                resident,                                 # b1 (1, H)
                resident,                                 # w2 (H, out_pad)
                resident,                                 # b2 (1, out_pad)
            ],
            out_specs=pl.BlockSpec((br, out_pad), lambda i: (i, 0)),
        ),
        compiler_params=pltpu.CompilerParams(
            dimension_semantics=("parallel",),
            vmem_limit_bytes=vmem_limit,
        ),
        cost_estimate=cost,
    )(x2d, w0, b0, w1, b1, w2p, b2p)

    # Drop padded output lanes (they hold sigmoid(0)=0.5 garbage).
    return out2d[:, :out_dim].reshape(B, S, out_dim)


def box_prediction_head(patch_features, prepared, block_rows=512):
    """patch_features: (B, S, H) float32. prepared: output of prepare_params.
    Returns (B, S, out_dim) in [0, 1]."""
    return _box_head(patch_features,
                     prepared["w0"], prepared["b0"],
                     prepared["w1"], prepared["b1"],
                     prepared["w2"], prepared["b2"],
                     out_dim=prepared["out_dim"], block_rows=block_rows)


def init_params(key, hidden_size, out_dim=4):
    """Deterministic synthetic params. Weights stored already-transposed as
    (in_features, out_features) so the kernel does x @ W."""
    ks = jax.random.split(key, 6)
    scale_h = 1.0 / jnp.sqrt(hidden_size)
    return {
        "w0": jax.random.uniform(ks[0], (hidden_size, hidden_size),
                                 jnp.float32, -scale_h, scale_h),
        "b0": jax.random.uniform(ks[1], (1, hidden_size),
                                 jnp.float32, -scale_h, scale_h),
        "w1": jax.random.uniform(ks[2], (hidden_size, hidden_size),
                                 jnp.float32, -scale_h, scale_h),
        "b1": jax.random.uniform(ks[3], (1, hidden_size),
                                 jnp.float32, -scale_h, scale_h),
        "w2": jax.random.uniform(ks[4], (hidden_size, out_dim),
                                 jnp.float32, -scale_h, scale_h),
        "b2": jax.random.uniform(ks[5], (1, out_dim),
                                 jnp.float32, -scale_h, scale_h),
    }


def _reference(patch_features, params):
    """Pure-JAX reference matching the PyTorch forward (exact erf GELU)."""
    h = patch_features @ params["w0"] + params["b0"][0]
    h = jax.nn.gelu(h, approximate=False)
    h = h @ params["w1"] + params["b1"][0]
    h = jax.nn.gelu(h, approximate=False)
    h = h @ params["w2"] + params["b2"][0]
    return jax.nn.sigmoid(h)


if __name__ == "__main__":
    B, S, H, OUT = 2, 8, 32, 4   # batch=2, seq(patches)=8, hidden=32
    key = jax.random.PRNGKey(0)
    k_x, k_p = jax.random.split(key)

    patch_features = jax.random.normal(k_x, (B, S, H), jnp.float32)
    params = init_params(k_p, H, OUT)
    ref = _reference(patch_features, params)

    # Exact fp32 path: bit-faithful to the PyTorch reference.
    prep_f32 = prepare_params(params, compute_dtype=jnp.float32)
    out_f32 = jax.block_until_ready(box_prediction_head(patch_features, prep_f32))
    assert out_f32.shape == (B, S, OUT), out_f32.shape
    assert jnp.allclose(out_f32, ref, atol=1e-5, rtol=1e-5), (
        float(jnp.max(jnp.abs(out_f32 - ref))))

    # Fast bf16-MXU path (fp32 accumulation, tanh GELU): looser tolerance.
    prep_bf16 = prepare_params(params, compute_dtype=jnp.bfloat16)
    out_bf16 = jax.block_until_ready(box_prediction_head(patch_features, prep_bf16))
    assert out_bf16.shape == (B, S, OUT), out_bf16.shape
    assert jnp.allclose(out_bf16, ref, atol=2.5e-2, rtol=0), (
        float(jnp.max(jnp.abs(out_bf16 - ref))))

    print("KERNEL_OK")
</pallas_src>

<mosaic_0001>
module attributes {stable_mosaic.version = 11 : i64} {
  func.func @_box_head_kernel(%arg0: i32, %arg1: memref<8x32xf32, #tpu.memory_space<vmem>>, %arg2: memref<32x32xf32, #tpu.memory_space<vmem>>, %arg3: memref<1x32xf32, #tpu.memory_space<vmem>>, %arg4: memref<32x32xf32, #tpu.memory_space<vmem>>, %arg5: memref<1x32xf32, #tpu.memory_space<vmem>>, %arg6: memref<32x128xf32, #tpu.memory_space<vmem>>, %arg7: memref<1x128xf32, #tpu.memory_space<vmem>>, %arg8: memref<8x128xf32, #tpu.memory_space<vmem>>) attributes {dimension_semantics = [#tpu.dimension_semantics<parallel>], iteration_bounds = array<i64: 2>, scalar_prefetch = 0 : i64, scratch_operands = 0 : i64, tpu.core_type = #tpu.core_type<tc>, window_params = [{transform_indices = @transform_0, window_bounds = array<i64: 8, 32>}, {pipeline_mode = #tpu.pipeline_mode<synchronous>, transform_indices = @transform_1, window_bounds = array<i64: 32, 32>}, {pipeline_mode = #tpu.pipeline_mode<synchronous>, transform_indices = @transform_2, window_bounds = array<i64: 1, 32>}, {pipeline_mode = #tpu.pipeline_mode<synchronous>, transform_indices = @transform_3, window_bounds = array<i64: 32, 32>}, {pipeline_mode = #tpu.pipeline_mode<synchronous>, transform_indices = @transform_4, window_bounds = array<i64: 1, 32>}, {pipeline_mode = #tpu.pipeline_mode<synchronous>, transform_indices = @transform_5, window_bounds = array<i64: 32, 128>}, {pipeline_mode = #tpu.pipeline_mode<synchronous>, transform_indices = @transform_6, window_bounds = array<i64: 1, 128>}, {transform_indices = @transform_7, window_bounds = array<i64: 8, 128>}]} {
    %c0 = arith.constant 0 : index
    %c0_0 = arith.constant 0 : index
    %0 = vector.load %arg1[%c0, %c0_0] : memref<8x32xf32, #tpu.memory_space<vmem>>, vector<8x32xf32>
    %c0_1 = arith.constant 0 : index
    %c0_2 = arith.constant 0 : index
    %1 = vector.load %arg2[%c0_1, %c0_2] : memref<32x32xf32, #tpu.memory_space<vmem>>, vector<32x32xf32>
    %cst = arith.constant dense<0.000000e+00> : vector<8x32xf32>
    %2 = tpu.matmul %0, %1, %cst {dimension_numbers = #tpu.dot_dimension_numbers<[1], [0], [0], [1], [0, 0, 1, 1], [], []>} : vector<8x32xf32>, vector<32x32xf32>, vector<8x32xf32> -> vector<8x32xf32>
    %c0_3 = arith.constant 0 : index
    %c0_4 = arith.constant 0 : index
    %3 = vector.load %arg3[%c0_3, %c0_4] : memref<1x32xf32, #tpu.memory_space<vmem>>, vector<1x32xf32>
    %4 = vector.broadcast %3 : vector<1x32xf32> to vector<8x32xf32>
    %5 = arith.addf %2, %4 : vector<8x32xf32>
    %cst_5 = arith.constant 5.000000e-01 : f32
    %6 = vector.broadcast %cst_5 : f32 to vector<8x32xf32>
    %7 = arith.mulf %6, %5 : vector<8x32xf32>
    %cst_6 = arith.constant 0.707106769 : f32
    %8 = vector.broadcast %cst_6 : f32 to vector<8x32xf32>
    %9 = arith.mulf %5, %8 : vector<8x32xf32>
    %10 = math.erf %9 : vector<8x32xf32>
    %cst_7 = arith.constant 1.000000e+00 : f32
    %11 = vector.broadcast %cst_7 : f32 to vector<8x32xf32>
    %12 = arith.addf %11, %10 : vector<8x32xf32>
    %13 = arith.mulf %7, %12 : vector<8x32xf32>
    %c0_8 = arith.constant 0 : index
    %c0_9 = arith.constant 0 : index
    %14 = vector.load %arg4[%c0_8, %c0_9] : memref<32x32xf32, #tpu.memory_space<vmem>>, vector<32x32xf32>
    %cst_10 = arith.constant dense<0.000000e+00> : vector<8x32xf32>
    %15 = tpu.matmul %13, %14, %cst_10 {dimension_numbers = #tpu.dot_dimension_numbers<[1], [0], [0], [1], [0, 0, 1, 1], [], []>} : vector<8x32xf32>, vector<32x32xf32>, vector<8x32xf32> -> vector<8x32xf32>
    %c0_11 = arith.constant 0 : index
    %c0_12 = arith.constant 0 : index
    %16 = vector.load %arg5[%c0_11, %c0_12] : memref<1x32xf32, #tpu.memory_space<vmem>>, vector<1x32xf32>
    %17 = vector.broadcast %16 : vector<1x32xf32> to vector<8x32xf32>
    %18 = arith.addf %15, %17 : vector<8x32xf32>
    %cst_13 = arith.constant 5.000000e-01 : f32
    %19 = vector.broadcast %cst_13 : f32 to vector<8x32xf32>
    %20 = arith.mulf %19, %18 : vector<8x32xf32>
    %cst_14 = arith.constant 0.707106769 : f32
    %21 = vector.broadcast %cst_14 : f32 to vector<8x32xf32>
    %22 = arith.mulf %18, %21 : vector<8x32xf32>
    %23 = math.erf %22 : vector<8x32xf32>
    %cst_15 = arith.constant 1.000000e+00 : f32
    %24 = vector.broadcast %cst_15 : f32 to vector<8x32xf32>
    %25 = arith.addf %24, %23 : vector<8x32xf32>
    %26 = arith.mulf %20, %25 : vector<8x32xf32>
    %c0_16 = arith.constant 0 : index
    %c0_17 = arith.constant 0 : index
    %27 = vector.load %arg6[%c0_16, %c0_17] : memref<32x128xf32, #tpu.memory_space<vmem>>, vector<32x128xf32>
    %cst_18 = arith.constant dense<0.000000e+00> : vector<8x128xf32>
    %28 = tpu.matmul %26, %27, %cst_18 {dimension_numbers = #tpu.dot_dimension_numbers<[1], [0], [0], [1], [0, 0, 1, 1], [], []>} : vector<8x32xf32>, vector<32x128xf32>, vector<8x128xf32> -> vector<8x128xf32>
    %c0_19 = arith.constant 0 : index
    %c0_20 = arith.constant 0 : index
    %29 = vector.load %arg7[%c0_19, %c0_20] : memref<1x128xf32, #tpu.memory_space<vmem>>, vector<1x128xf32>
    %30 = vector.broadcast %29 : vector<1x128xf32> to vector<8x128xf32>
    %31 = arith.addf %28, %30 : vector<8x128xf32>
    %32 = arith.negf %31 : vector<8x128xf32>
    %33 = math.exp %32 : vector<8x128xf32>
    %cst_21 = arith.constant 1.000000e+00 : f32
    %34 = vector.broadcast %cst_21 : f32 to vector<8x128xf32>
    %35 = arith.addf %34, %33 : vector<8x128xf32>
    %36 = arith.divf %34, %35 : vector<8x128xf32>
    %c0_22 = arith.constant 0 : index
    %c0_23 = arith.constant 0 : index
    %37 = vector.load %arg8[%c0_22, %c0_23] : memref<8x128xf32, #tpu.memory_space<vmem>>, vector<8x128xf32>
    tpu.vector_store %arg8[%c0_22, %c0_23], %36 {strides = array<i32>} : memref<8x128xf32, #tpu.memory_space<vmem>>, vector<8x128xf32>,
    return
  }
  func.func @transform_0(%arg0: i32) -> (i32, i32) {
    %c0_i32 = arith.constant 0 : i32
    %c0_i32_0 = arith.constant 0 : i32
    return %arg0, %c0_i32 : i32, i32
  }
  func.func @transform_1(%arg0: i32) -> (i32, i32) {
    %c0_i32 = arith.constant 0 : i32
    %c0_i32_0 = arith.constant 0 : i32
    %c0_i32_1 = arith.constant 0 : i32
    return %c0_i32, %c0_i32_0 : i32, i32
  }
  func.func @transform_2(%arg0: i32) -> (i32, i32) {
    %c0_i32 = arith.constant 0 : i32
    %c0_i32_0 = arith.constant 0 : i32
    %c0_i32_1 = arith.constant 0 : i32
    return %c0_i32, %c0_i32_0 : i32, i32
  }
  func.func @transform_3(%arg0: i32) -> (i32, i32) {
    %c0_i32 = arith.constant 0 : i32
    %c0_i32_0 = arith.constant 0 : i32
    %c0_i32_1 = arith.constant 0 : i32
    return %c0_i32, %c0_i32_0 : i32, i32
  }
  func.func @transform_4(%arg0: i32) -> (i32, i32) {
    %c0_i32 = arith.constant 0 : i32
    %c0_i32_0 = arith.constant 0 : i32
    %c0_i32_1 = arith.constant 0 : i32
    return %c0_i32, %c0_i32_0 : i32, i32
  }
  func.func @transform_5(%arg0: i32) -> (i32, i32) {
    %c0_i32 = arith.constant 0 : i32
    %c0_i32_0 = arith.constant 0 : i32
    %c0_i32_1 = arith.constant 0 : i32
    return %c0_i32, %c0_i32_0 : i32, i32
  }
  func.func @transform_6(%arg0: i32) -> (i32, i32) {
    %c0_i32 = arith.constant 0 : i32
    %c0_i32_0 = arith.constant 0 : i32
    %c0_i32_1 = arith.constant 0 : i32
    return %c0_i32, %c0_i32_0 : i32, i32
  }
  func.func @transform_7(%arg0: i32) -> (i32, i32) {
    %c0_i32 = arith.constant 0 : i32
    %c0_i32_0 = arith.constant 0 : i32
    return %arg0, %c0_i32 : i32, i32
  }
}

</mosaic_0001>

<llo_original>
// kernel: _box_head.1
$region0: #{_box_head.1}
  #allocation0 [shape = 'u32[]', space=smem, size = 0x4, offset = 0x4, fixed_abs, tag = 'smem constant byte address 0x4 - core index']
  #allocation1 [shape = 'u32[144,128]{1,0:T(1,128)}', space=vmem, size = 0x12000, scoped, tag = 'internal scratch']
  %s0 = inlined_call_operand.hbm [shape: f32[16,32], index: 0, kind: input, shape index: {}]
  %s1 = inlined_call_operand.hbm [shape: f32[32,32], index: 1, kind: input, shape index: {}]
  %s2 = inlined_call_operand.vmem [shape: f32[1,32], index: 2, kind: input, shape index: {}]
  %s3 = inlined_call_operand.hbm [shape: f32[32,32], index: 3, kind: input, shape index: {}]
  %s4 = inlined_call_operand.vmem [shape: f32[1,32], index: 4, kind: input, shape index: {}]
  %s5 = inlined_call_operand.hbm [shape: f32[32,128], index: 5, kind: input, shape index: {}]
  %s6 = inlined_call_operand.vmem [shape: f32[1,128], index: 6, kind: input, shape index: {}]
  %s7 = inlined_call_operand.vmem [shape: f32[16,128], index: 7, kind: output, shape index: {}]
  %s8 = sld [smem:[#allocation0]]
  $region77: #{_box_head.1} parent=0
    _
  %s10 = ssub.s32 1, %s8
  %s11 = scalar_select 0, %s10, %s8
  $region1: #{_box_head.1} parent=0
    #allocation2 [shape = 'u8[8192]{0}', space=vmem, size = 0x2000, scoped, tag = 'input window, operand 0']
    #allocation3 [shape = 's32[2]{0}', space=sflag, size = 0x8, scoped, tag = 'scoped memory for _box_head.1']
    #allocation4 [shape = 'u8[16384]{0}', space=vmem, size = 0x4000, scoped, tag = 'input window, operand 1, single buffered']
    #allocation5 [shape = 's32[1]{0}', space=sflag, size = 0x4, scoped, tag = 'scoped memory for _box_head.1']
    #allocation6 [shape = 'u8[16384]{0}', space=vmem, size = 0x4000, scoped, tag = 'input window, operand 3, single buffered']
    #allocation7 [shape = 'u8[16384]{0}', space=vmem, size = 0x4000, scoped, tag = 'input window, operand 5, single buffered']
    #allocation8 [shape = 's32[1]{0}', space=sflag, size = 0x4, scoped, tag = 'scoped memory for _box_head.1']
    %12 = vsyncpa [#allocation3], 0
    %s13 = scalar_lea.sflag [#allocation3], 1
    %14 = vsyncpa %s13, 0
    %15 = vsyncpa [#allocation5], 0
    %16 = vsyncpa [#allocation8], 0
    loop: start=0, step=1, limit=4
    $region2: #{_box_head.1} parent=1 // loop_pre_header
      _
    $region3: #{_box_head.1} parent=1 // loop_header
      %s18 = sphi 0, %s22
      %p19 = scmp.ge.s32.totalorder %s18, 4
      %s28 = sphi 0, %s30
      %s31 = sphi 0, %s28
      %s32 = sphi 0, %s31
      %s48 = sphi 0, %s32
      %s52 = sphi 0, %s52
      %s54 = sphi 0, %s52
      %s55 = sphi 0, %s54
      %s69 = sphi 0, %s55
      %s73 = sphi 0, %s73
      %s75 = sphi 0, %s73
      %s76 = sphi 0, %s75
      %s90 = sphi 0, %s76
      %s94 = sphi 0, %s94
      %s96 = sphi 0, %s94
      %s97 = sphi 0, %s96
      %s111 = sphi 0, %s97
      %s115 = sphi 0, %s115
      %s117 = sphi 0, %s115
      %s118 = sphi 0, %s117
      %s132 = sphi 0, %s118
      %s136 = sphi 0, %s136
      %s138 = sphi 0, %s136
      %s139 = sphi 0, %s138
      %s153 = sphi 0, %s139
      %s157 = sphi 0, %s157
      %s159 = sphi 0, %s157
      %s160 = sphi 0, %s159
      %s174 = sphi 0, %s160
      %s180 = sphi 0, %s182
      %s183 = sphi 0, %s180
      %s184 = sphi 0, %s183
      %s200 = sphi 0, %s184
    $region4: #{_box_head.1} parent=1 // loop_header_branch
      %21 = sbr.rel (%p19) target = $region8
    $region5: #{_box_head.1} parent=1 // loop_body
      %s23 = ssub.s32 %s18, 1
      %s24 = ssub.s32 %s18, 2
      %s25 = sadd.s32 %s18, 1
      %s26 = ssub.s32 %s18, %s25
      %p27 = scmp.eq.s32.totalorder %s26, 0
      %s29 = sadd.s32 %s28, 1
      %s30 = scalar_select %p27, %s28, %s29
      %p33 = pneg %p27
      %p34 = scmp.eq.s32.totalorder %s18, 1
      %p35 = por %p33, %p34
      %p36 = scmp.ne.s32.totalorder %s28, %s31
      %p37 = scmp.eq.s32.totalorder %s18, 0
      %p38 = por %p36, %p37
      %p39 = scmp.ne.s32.totalorder %s28, %s31
      %p40 = scmp.eq.s32.totalorder %s23, 1
      %p41 = por %p39, %p40
      %p42 = scmp.ne.s32.totalorder %s31, %s32
      %p43 = scmp.eq.s32.totalorder %s23, 0
      %p44 = por %p42, %p43
      %p45 = scmp.ne.s32.totalorder %s31, %s32
      %p46 = scmp.eq.s32.totalorder %s24, 1
      %p47 = por %p45, %p46
      %p49 = scmp.ne.s32.totalorder %s32, %s48
      %p50 = scmp.eq.s32.totalorder %s24, 0
      %p51 = por %p49, %p50
      %s53 = sadd.s32 %s52, 1
      %p56 = scmp.eq.s32.totalorder %s18, 1
      %p57 = scmp.ne.s32.totalorder %s52, %s54
      %p58 = scmp.eq.s32.totalorder %s18, 0
      %p59 = por %p57, %p58
      %p60 = scmp.ne.s32.totalorder %s52, %s54
      %p61 = scmp.eq.s32.totalorder %s23, 1
      %p62 = por %p60, %p61
      %p63 = scmp.ne.s32.totalorder %s54, %s55
      %p64 = scmp.eq.s32.totalorder %s23, 0
      %p65 = por %p63, %p64
      %p66 = scmp.ne.s32.totalorder %s54, %s55
      %p67 = scmp.eq.s32.totalorder %s24, 1
      %p68 = por %p66, %p67
      %p70 = scmp.ne.s32.totalorder %s55, %s69
      %p71 = scmp.eq.s32.totalorder %s24, 0
      %p72 = por %p70, %p71
      %s74 = sadd.s32 %s73, 1
      %p77 = scmp.eq.s32.totalorder %s18, 1
      %p78 = scmp.ne.s32.totalorder %s73, %s75
      %p79 = scmp.eq.s32.totalorder %s18, 0
      %p80 = por %p78, %p79
      %p81 = scmp.ne.s32.totalorder %s73, %s75
      %p82 = scmp.eq.s32.totalorder %s23, 1
      %p83 = por %p81, %p82
      %p84 = scmp.ne.s32.totalorder %s75, %s76
      %p85 = scmp.eq.s32.totalorder %s23, 0
      %p86 = por %p84, %p85
      %p87 = scmp.ne.s32.totalorder %s75, %s76
      %p88 = scmp.eq.s32.totalorder %s24, 1
      %p89 = por %p87, %p88
      %p91 = scmp.ne.s32.totalorder %s76, %s90
      %p92 = scmp.eq.s32.totalorder %s24, 0
      %p93 = por %p91, %p92
      %s95 = sadd.s32 %s94, 1
      %p98 = scmp.eq.s32.totalorder %s18, 1
      %p99 = scmp.ne.s32.totalorder %s94, %s96
      %p100 = scmp.eq.s32.totalorder %s18, 0
      %p101 = por %p99, %p100
      %p102 = scmp.ne.s32.totalorder %s94, %s96
      %p103 = scmp.eq.s32.totalorder %s23, 1
      %p104 = por %p102, %p103
      %p105 = scmp.ne.s32.totalorder %s96, %s97
      %p106 = scmp.eq.s32.totalorder %s23, 0
      %p107 = por %p105, %p106
      %p108 = scmp.ne.s32.totalorder %s96, %s97
      %p109 = scmp.eq.s32.totalorder %s24, 1
      %p110 = por %p108, %p109
      %p112 = scmp.ne.s32.totalorder %s97, %s111
      %p113 = scmp.eq.s32.totalorder %s24, 0
      %p114 = por %p112, %p113
      %s116 = sadd.s32 %s115, 1
      %p119 = scmp.eq.s32.totalorder %s18, 1
      %p120 = scmp.ne.s32.totalorder %s115, %s117
      %p121 = scmp.eq.s32.totalorder %s18, 0
      %p122 = por %p120, %p121
      %p123 = scmp.ne.s32.totalorder %s115, %s117
      %p124 = scmp.eq.s32.totalorder %s23, 1
      %p125 = por %p123, %p124
      %p126 = scmp.ne.s32.totalorder %s117, %s118
      %p127 = scmp.eq.s32.totalorder %s23, 0
      %p128 = por %p126, %p127
      %p129 = scmp.ne.s32.totalorder %s117, %s118
      %p130 = scmp.eq.s32.totalorder %s24, 1
      %p131 = por %p129, %p130
      %p133 = scmp.ne.s32.totalorder %s118, %s132
      %p134 = scmp.eq.s32.totalorder %s24, 0
      %p135 = por %p133, %p134
      %s137 = sadd.s32 %s136, 1
      %p140 = scmp.eq.s32.totalorder %s18, 1
      %p141 = scmp.ne.s32.totalorder %s136, %s138
      %p142 = scmp.eq.s32.totalorder %s18, 0
      %p143 = por %p141, %p142
      %p144 = scmp.ne.s32.totalorder %s136, %s138
      %p145 = scmp.eq.s32.totalorder %s23, 1
      %p146 = por %p144, %p145
      %p147 = scmp.ne.s32.totalorder %s138, %s139
      %p148 = scmp.eq.s32.totalorder %s23, 0
      %p149 = por %p147, %p148
      %p150 = scmp.ne.s32.totalorder %s138, %s139
      %p151 = scmp.eq.s32.totalorder %s24, 1
      %p152 = por %p150, %p151
      %p154 = scmp.ne.s32.totalorder %s139, %s153
      %p155 = scmp.eq.s32.totalorder %s24, 0
      %p156 = por %p154, %p155
      %s158 = sadd.s32 %s157, 1
      %p161 = scmp.eq.s32.totalorder %s18, 1
      %p162 = scmp.ne.s32.totalorder %s157, %s159
      %p163 = scmp.eq.s32.totalorder %s18, 0
      %p164 = por %p162, %p163
      %p165 = scmp.ne.s32.totalorder %s157, %s159
      %p166 = scmp.eq.s32.totalorder %s23, 1
      %p167 = por %p165, %p166
      %p168 = scmp.ne.s32.totalorder %s159, %s160
      %p169 = scmp.eq.s32.totalorder %s23, 0
      %p170 = por %p168, %p169
      %p171 = scmp.ne.s32.totalorder %s159, %s160
      %p172 = scmp.eq.s32.totalorder %s24, 1
      %p173 = por %p171, %p172
      %p175 = scmp.ne.s32.totalorder %s160, %s174
      %p176 = scmp.eq.s32.totalorder %s24, 0
      %p177 = por %p175, %p176
      %s178 = ssub.s32 %s18, %s25
      %p179 = scmp.eq.s32.totalorder %s178, 0
      %s181 = sadd.s32 %s180, 1
      %s182 = scalar_select %p179, %s180, %s181
      %p185 = pneg %p179
      %p186 = scmp.eq.s32.totalorder %s18, 1
      %p187 = por %p185, %p186
      %p188 = scmp.ne.s32.totalorder %s180, %s183
      %p189 = scmp.eq.s32.totalorder %s18, 0
      %p190 = por %p188, %p189
      %p191 = scmp.ne.s32.totalorder %s180, %s183
      %p192 = scmp.eq.s32.totalorder %s23, 1
      %p193 = por %p191, %p192
      %p194 = scmp.ne.s32.totalorder %s183, %s184
      %p195 = scmp.eq.s32.totalorder %s23, 0
      %p196 = por %p194, %p195
      %p197 = scmp.ne.s32.totalorder %s183, %s184
      %p198 = scmp.eq.s32.totalorder %s24, 1
      %p199 = por %p197, %p198
      %p201 = scmp.ne.s32.totalorder %s184, %s200
      %p202 = scmp.eq.s32.totalorder %s24, 0
      %p203 = por %p201, %p202
      %p204 = scmp.le.s32.totalorder 1, %s18
      %p205 = scmp.lt.s32.totalorder %s18, 3
      %p206 = pnand %p204, %p205
      %p207 = pneg %p206
      // Predicated region
      $region9: #{_box_head.1} parent=5 // pred_check
        _
      $region10: #{_box_head.1} parent=5 // pred_check_branch
        %209 = sbr.rel (%p206) target = $region12
      $region11: #{_box_head.1} parent=5 // pred_region
        %s210 = ssub.s32 %s18, 1
        // Predicated region
        $region13: #{_box_head.1} parent=11 // pred_check
          %p211 = pneg %p65
        $region14: #{_box_head.1} parent=11 // pred_check_branch
          %213 = sbr.rel (%p211) target = $region16
        $region15: #{_box_head.1} parent=11 // pred_region
          %s215 = ssub.s32 512, 512
          %216 = vsyncadd [#allocation5], %s215
          %s217 = sshll.u32 [#allocation4], 4
          %s218 = int_to_ptr.vmem [resolvable:$true] %s217
          %223 = dma.hbm_to_vmem [thread:$0]  %s1, 512, %s218, [#allocation5], 128, 128, 8
        $region16: #{_box_head.1} parent=11 // pred_fallthru
          _
        // Predicated region
        $region17: #{_box_head.1} parent=11 // pred_check
          %p224 = pneg %p86
        $region18: #{_box_head.1} parent=11 // pred_check_branch
          %226 = sbr.rel (%p224) target = $region20
        $region19: #{_box_head.1} parent=11 // pred_region
          _
        $region20: #{_box_head.1} parent=11 // pred_fallthru
          _
        // Predicated region
        $region21: #{_box_head.1} parent=11 // pred_check
          %p227 = pneg %p107
        $region22: #{_box_head.1} parent=11 // pred_check_branch
          %229 = sbr.rel (%p227) target = $region24
        $region23: #{_box_head.1} parent=11 // pred_region
          %s231 = ssub.s32 512, 512
          %232 = vsyncadd [#allocation5], %s231
          %s233 = sshll.u32 [#allocation6], 4
          %s234 = int_to_ptr.vmem [resolvable:$true] %s233
          %239 = dma.hbm_to_vmem [thread:$0]  %s3, 512, %s234, [#allocation5], 128, 128, 8
        $region24: #{_box_head.1} parent=11 // pred_fallthru
          _
        // Predicated region
        $region25: #{_box_head.1} parent=11 // pred_check
          %p240 = pneg %p128
        $region26: #{_box_head.1} parent=11 // pred_check_branch
          %242 = sbr.rel (%p240) target = $region28
        $region27: #{_box_head.1} parent=11 // pred_region
          _
        $region28: #{_box_head.1} parent=11 // pred_fallthru
          _
        // Predicated region
        $region29: #{_box_head.1} parent=11 // pred_check
          %p243 = pneg %p149
        $region30: #{_box_head.1} parent=11 // pred_check_branch
          %245 = sbr.rel (%p243) target = $region32
        $region31: #{_box_head.1} parent=11 // pred_region
          %s247 = ssub.s32 512, 512
          %248 = vsyncadd [#allocation8], %s247
          %s249 = sshll.u32 [#allocation7], 4
          %s250 = int_to_ptr.vmem [resolvable:$true] %s249
          %255 = dma.hbm_to_vmem [thread:$0]  %s5, 512, %s250, [#allocation8], 128, 128, 8
        $region32: #{_box_head.1} parent=11 // pred_fallthru
          _
        // Predicated region
        $region33: #{_box_head.1} parent=11 // pred_check
          %p256 = pneg %p170
        $region34: #{_box_head.1} parent=11 // pred_check_branch
          %258 = sbr.rel (%p256) target = $region36
        $region35: #{_box_head.1} parent=11 // pred_region
          _
        $region36: #{_box_head.1} parent=11 // pred_fallthru
          _
      $region12: #{_box_head.1} parent=5 // pred_fallthru
        _
      %p259 = scmp.lt.s32.totalorder %s18, 2
      // Predicated region
      $region37: #{_box_head.1} parent=5 // pred_check
        %p260 = pneg %p259
      $region38: #{_box_head.1} parent=5 // pred_check_branch
        %262 = sbr.rel (%p260) target = $region40
      $region39: #{_box_head.1} parent=5 // pred_region
        // Predicated region
        $region41: #{_box_head.1} parent=39 // pred_check
          %p263 = pneg %p38
        $region42: #{_box_head.1} parent=39 // pred_check_branch
          %265 = sbr.rel (%p263) target = $region44
        $region43: #{_box_head.1} parent=39 // pred_region
          %s266 = sand.u32 %s28, 1
          %s267 = scalar_lea.sflag [#allocation3], %s266
          %s268 = sand.u32 %s28, 1
          %s269 = smul.addr %s268, 8
          %s270 = scalar_lea.vmem [#allocation2], %s269
          %s272 = ssub.s32 128, 128
          %273 = vsyncadd %s267, %s272
          %s274 = smul.addr %s18, 128
          %s275 = scalar_lea.hbm %s0, %s274
          %s277 = sshll.u32 %s270, 4
          %s278 = int_to_ptr.vmem [resolvable:$true] %s277
          %280 = dma.hbm_to_vmem [thread:$0]  %s275, 128, %s278, %s267
        $region44: #{_box_head.1} parent=39 // pred_fallthru
          _
      $region40: #{_box_head.1} parent=5 // pred_fallthru
        _
      %p281 = scmp.le.s32.totalorder 1, %s18
      %p282 = scmp.lt.s32.totalorder %s18, 3
      %p283 = pnand %p281, %p282
      %p284 = pneg %p283
      // Predicated region
      $region45: #{_box_head.1} parent=5 // pred_check
        _
      $region46: #{_box_head.1} parent=5 // pred_check_branch
        %286 = sbr.rel (%p283) target = $region48
      $region47: #{_box_head.1} parent=5 // pred_region
        %s287 = ssub.s32 %s18, 1
        %s288 = sand.u32 %s31, 1
        %s289 = scalar_lea.sflag [#allocation3], %s288
        %s290 = sand.u32 %s31, 1
        %s291 = smul.addr %s290, 8
        %s292 = scalar_lea.vmem [#allocation2], %s291
        // Predicated region
        $region49: #{_box_head.1} parent=47 // pred_check
          %p293 = pneg %p44
        $region50: #{_box_head.1} parent=47 // pred_check_branch
          %295 = sbr.rel (%p293) target = $region52
        $region51: #{_box_head.1} parent=47 // pred_region
          %296 = dma.done %s289, 128
        $region52: #{_box_head.1} parent=47 // pred_fallthru
          _
        // Predicated region
        $region53: #{_box_head.1} parent=47 // pred_check
          %p297 = pneg %p65
        $region54: #{_box_head.1} parent=47 // pred_check_branch
          %299 = sbr.rel (%p297) target = $region56
        $region55: #{_box_head.1} parent=47 // pred_region
          %300 = dma.done [#allocation5], 512
        $region56: #{_box_head.1} parent=47 // pred_fallthru
          _
        // Predicated region
        $region57: #{_box_head.1} parent=47 // pred_check
          %p301 = pneg %p107
        $region58: #{_box_head.1} parent=47 // pred_check_branch
          %303 = sbr.rel (%p301) target = $region60
        $region59: #{_box_head.1} parent=47 // pred_region
          %304 = dma.done [#allocation5], 512
        $region60: #{_box_head.1} parent=47 // pred_fallthru
          _
        // Predicated region
        $region61: #{_box_head.1} parent=47 // pred_check
          %p305 = pneg %p149
        $region62: #{_box_head.1} parent=47 // pred_check_branch
          %307 = sbr.rel (%p305) target = $region64
        $region63: #{_box_head.1} parent=47 // pred_region
          %308 = dma.done [#allocation8], 512
        $region64: #{_box_head.1} parent=47 // pred_fallthru
          _
        %s309 = sand.u32 %s31, 1
        %s310 = scalar_lea.sflag [#allocation3], %s309
        %s311 = sand.u32 %s31, 1
        %s312 = smul.addr %s311, 8
        %s313 = scalar_lea.vmem [#allocation2], %s312
        %p314 = pneg %p44
        %p315 = pneg %p41
        %p316 = pneg %p65
        %p317 = pneg %p62
        %p318 = pneg %p86
        %p319 = pneg %p83
        %p320 = pneg %p107
        %p321 = pneg %p104
        %p322 = pneg %p128
        %p323 = pneg %p125
        %p324 = pneg %p149
        %p325 = pneg %p146
        %p326 = pneg %p170
        %p327 = pneg %p167
        %p328 = pneg %p196
        %p329 = pneg %p193
        %p330 = scmp.lt.s32.totalorder %s23, 1
        %s331 = scalar_select %p330, %s23, 1
        %s332 = smul.addr %s331, 8
        %s333 = scalar_lea.vmem %s7, %s332
        %p334 = scmp.lt.s32.totalorder %s23, 1
        %s335 = scalar_select %p334, %s23, 1
        %s336 = smul.addr %s335, 8
        %s337 = scalar_lea.vmem %s7, %s336
        %v338 = vld [vmem:[%s292] sm:$0xff]
        %v339 = vld [vmem:[#allocation4] sm:$0xff]
        %v340 = vld [vmem:[#allocation4 + $0x8] sm:$0xff]
        %v341 = vld [vmem:[#allocation4 + $0x10] sm:$0xff]
        %v342 = vld [vmem:[#allocation4 + $0x18] sm:$0xff]
        %v343 = vld [vmem:[%s2] sm:$0x1]
        %v345 = vlaneseq
        %v346 = vshrl.u32 %v345, 7
        %v347 = vsub.s32 0, %v346
        %v348 = vrot.slane %v343, %v347
        %vm350 = vcmask 261120
        %v352 = vsel %vm350, %v338, 0
        %354 = vmatprep.subr.mxu0 0.0
        %355 = vmatpush1.msra.mxu0 %v339
        %356 = vmatprep.subr.mxu0 0.0
        %357 = vmatpush1.msra.mxu0 %v340
        %358 = vmatprep.subr.mxu0 0.0
        %359 = vmatpush1.msra.mxu0 %v341
        %360 = vmatprep.subr.mxu0 0.0
        %361 = vmatpush1.msra.mxu0 %v342
        %362 = vmatprep.subr.mxu0 0.0
        %363 = vmatpush1.msra.mxu0 0.0
        %364 = vmatprep.subr.mxu0 0.0
        %365 = vmatpush1.msra.mxu0 0.0
        %366 = vmatprep.subr.mxu0 0.0
        %367 = vmatpush1.msra.mxu0 0.0
        %368 = vmatprep.subr.mxu0 0.0
        %369 = vmatpush1.msra.mxu0 0.0
        %370 = vmatprep.subr.mxu0 0.0
        %371 = vmatpush1.msra.mxu0 0.0
        %372 = vmatprep.subr.mxu0 0.0
        %373 = vmatpush1.msra.mxu0 0.0
        %374 = vmatprep.subr.mxu0 0.0
        %375 = vmatpush1.msra.mxu0 0.0
        %376 = vmatprep.subr.mxu0 0.0
        %377 = vmatpush1.msra.mxu0 0.0
        %378 = vmatprep.subr.mxu0 0.0
        %379 = vmatpush1.msra.mxu0 0.0
        %380 = vmatprep.subr.mxu0 0.0
        %381 = vmatpush1.msra.mxu0 0.0
        %382 = vmatprep.subr.mxu0 0.0
        %383 = vmatpush1.msra.mxu0 0.0
        %384 = vmatprep.subr.mxu0 0.0
        %385 = vmatpush1.msra.mxu0 0.0
        %386 = vmatprep.subr.mxu0 0.0
        %387 = vmatpush1.msra.mxu0 0.0
        %388 = vmatprep.subr.mxu0 0.0
        %389 = vmatpush1.msra.mxu0 0.0
        %390 = vmatprep.subr.mxu0 0.0
        %391 = vmatpush1.msra.mxu0 0.0
        %392 = vmatprep.subr.mxu0 0.0
        %393 = vmatpush1.msra.mxu0 0.0
        %394 = vmatprep.subr.mxu0 0.0
        %395 = vmatpush1.msra.mxu0 0.0
        %396 = vmatprep.subr.mxu0 0.0
        %397 = vmatpush1.msra.mxu0 0.0
        %398 = vmatprep.subr.mxu0 0.0
        %399 = vmatpush1.msra.mxu0 0.0
        %400 = vmatprep.subr.mxu0 0.0
        %401 = vmatpush1.msra.mxu0 0.0
        %402 = vmatprep.subr.mxu0 0.0
        %403 = vmatpush1.msra.mxu0 0.0
        %404 = vmatprep.subr.mxu0 0.0
        %405 = vmatpush1.msra.mxu0 0.0
        %406 = vmatprep.subr.mxu0 0.0
        %407 = vmatpush1.msra.mxu0 0.0
        %408 = vmatprep.subr.mxu0 0.0
        %409 = vmatpush1.msra.mxu0 0.0
        %410 = vmatprep.subr.mxu0 0.0
        %411 = vmatpush1.msra.mxu0 0.0
        %412 = vmatprep.subr.mxu0 0.0
        %413 = vmatpush1.msra.mxu0 0.0
        %414 = vmatprep.subr.mxu0 0.0
        %415 = vmatpush1.msra.mxu0 0.0
        %416 = vmatprep.subr.mxu0 0.0
        %417 = vmatpush1.msra.mxu0 0.0
        %418 = vmatprep.mubr.f32.mxu0 0.0
        %419 = vmatmul.mubr.f32.gmra.mrb[0].mxu0 %v352
        %v420 = vpop.f32.mrb[0].mxu0
        %v421 = vadd.f32 %v348, %v420
        %v422 = vpop.f32.mrb[0].mxu0
        %423 = vdwg.mxu0
        %v424 = vmul.f32 %v421, 0.5
        %v425 = vmul.f32 %v421, 0.70710677
        %v426 = verf.f32.pop %v425
        %v427 = vadd.f32 %v426, 1.0
        %v428 = vmul.f32 %v424, %v427
        %v429 = vld [vmem:[#allocation6] sm:$0xff]
        %v430 = vld [vmem:[#allocation6 + $0x8] sm:$0xff]
        %v431 = vld [vmem:[#allocation6 + $0x10] sm:$0xff]
        %v432 = vld [vmem:[#allocation6 + $0x18] sm:$0xff]
        %v433 = vld [vmem:[%s4] sm:$0x1]
        %v435 = vlaneseq
        %v436 = vshrl.u32 %v435, 7
        %v437 = vsub.s32 0, %v436
        %v438 = vrot.slane %v433, %v437
        %v441 = vsel %vm350, %v428, 0
        %443 = vmatprep.subr.mxu0 0.0
        %444 = vmatpush1.msra.mxu0 %v429
        %445 = vmatprep.subr.mxu0 0.0
        %446 = vmatpush1.msra.mxu0 %v430
        %447 = vmatprep.subr.mxu0 0.0
        %448 = vmatpush1.msra.mxu0 %v431
        %449 = vmatprep.subr.mxu0 0.0
        %450 = vmatpush1.msra.mxu0 %v432
        %451 = vmatprep.subr.mxu0 0.0
        %452 = vmatpush1.msra.mxu0 0.0
        %453 = vmatprep.subr.mxu0 0.0
        %454 = vmatpush1.msra.mxu0 0.0
        %455 = vmatprep.subr.mxu0 0.0
        %456 = vmatpush1.msra.mxu0 0.0
        %457 = vmatprep.subr.mxu0 0.0
        %458 = vmatpush1.msra.mxu0 0.0
        %459 = vmatprep.subr.mxu0 0.0
        %460 = vmatpush1.msra.mxu0 0.0
        %461 = vmatprep.subr.mxu0 0.0
        %462 = vmatpush1.msra.mxu0 0.0
        %463 = vmatprep.subr.mxu0 0.0
        %464 = vmatpush1.msra.mxu0 0.0
        %465 = vmatprep.subr.mxu0 0.0
        %466 = vmatpush1.msra.mxu0 0.0
        %467 = vmatprep.subr.mxu0 0.0
        %468 = vmatpush1.msra.mxu0 0.0
        %469 = vmatprep.subr.mxu0 0.0
        %470 = vmatpush1.msra.mxu0 0.0
        %471 = vmatprep.subr.mxu0 0.0
        %472 = vmatpush1.msra.mxu0 0.0
        %473 = vmatprep.subr.mxu0 0.0
        %474 = vmatpush1.msra.mxu0 0.0
        %475 = vmatprep.subr.mxu0 0.0
        %476 = vmatpush1.msra.mxu0 0.0
        %477 = vmatprep.subr.mxu0 0.0
        %478 = vmatpush1.msra.mxu0 0.0
        %479 = vmatprep.subr.mxu0 0.0
        %480 = vmatpush1.msra.mxu0 0.0
        %481 = vmatprep.subr.mxu0 0.0
        %482 = vmatpush1.msra.mxu0 0.0
        %483 = vmatprep.subr.mxu0 0.0
        %484 = vmatpush1.msra.mxu0 0.0
        %485 = vmatprep.subr.mxu0 0.0
        %486 = vmatpush1.msra.mxu0 0.0
        %487 = vmatprep.subr.mxu0 0.0
        %488 = vmatpush1.msra.mxu0 0.0
        %489 = vmatprep.subr.mxu0 0.0
        %490 = vmatpush1.msra.mxu0 0.0
        %491 = vmatprep.subr.mxu0 0.0
        %492 = vmatpush1.msra.mxu0 0.0
        %493 = vmatprep.subr.mxu0 0.0
        %494 = vmatpush1.msra.mxu0 0.0
        %495 = vmatprep.subr.mxu0 0.0
        %496 = vmatpush1.msra.mxu0 0.0
        %497 = vmatprep.subr.mxu0 0.0
        %498 = vmatpush1.msra.mxu0 0.0
        %499 = vmatprep.subr.mxu0 0.0
        %500 = vmatpush1.msra.mxu0 0.0
        %501 = vmatprep.subr.mxu0 0.0
        %502 = vmatpush1.msra.mxu0 0.0
        %503 = vmatprep.subr.mxu0 0.0
        %504 = vmatpush1.msra.mxu0 0.0
        %505 = vmatprep.subr.mxu0 0.0
        %506 = vmatpush1.msra.mxu0 0.0
        %507 = vmatprep.mubr.f32.mxu0 0.0
        %508 = vmatmul.mubr.f32.gmra.mrb[0].mxu0 %v441
        %v509 = vpop.f32.mrb[0].mxu0
        %v510 = vadd.f32 %v438, %v509
        %v511 = vpop.f32.mrb[0].mxu0
        %512 = vdwg.mxu0
        %v513 = vmul.f32 %v510, 0.5
        %v514 = vmul.f32 %v510, 0.70710677
        %v515 = verf.f32.pop %v514
        %v516 = vadd.f32 %v515, 1.0
        %v517 = vmul.f32 %v513, %v516
        %v518 = vld [vmem:[#allocation7] sm:$0xff]
        %v519 = vld [vmem:[#allocation7 + $0x8] sm:$0xff]
        %v520 = vld [vmem:[#allocation7 + $0x10] sm:$0xff]
        %v521 = vld [vmem:[#allocation7 + $0x18] sm:$0xff]
        %v522 = vld [vmem:[%s6] sm:$0x1]
        %v524 = vlaneseq
        %v525 = vshrl.u32 %v524, 7
        %v526 = vsub.s32 0, %v525
        %v527 = vrot.slane %v522, %v526
        %v530 = vsel %vm350, %v517, 0
        %532 = vmatprep.subr.mxu0 0.0
        %533 = vmatpush1.msra.mxu0 %v518
        %534 = vmatprep.subr.mxu0 0.0
        %535 = vmatpush1.msra.mxu0 %v519
        %536 = vmatprep.subr.mxu0 0.0
        %537 = vmatpush1.msra.mxu0 %v520
        %538 = vmatprep.subr.mxu0 0.0
        %539 = vmatpush1.msra.mxu0 %v521
        %540 = vmatprep.subr.mxu0 0.0
        %541 = vmatpush1.msra.mxu0 0.0
        %542 = vmatprep.subr.mxu0 0.0
        %543 = vmatpush1.msra.mxu0 0.0
        %544 = vmatprep.subr.mxu0 0.0
        %545 = vmatpush1.msra.mxu0 0.0
        %546 = vmatprep.subr.mxu0 0.0
        %547 = vmatpush1.msra.mxu0 0.0
        %548 = vmatprep.subr.mxu0 0.0
        %549 = vmatpush1.msra.mxu0 0.0
        %550 = vmatprep.subr.mxu0 0.0
        %551 = vmatpush1.msra.mxu0 0.0
        %552 = vmatprep.subr.mxu0 0.0
        %553 = vmatpush1.msra.mxu0 0.0
        %554 = vmatprep.subr.mxu0 0.0
        %555 = vmatpush1.msra.mxu0 0.0
        %556 = vmatprep.subr.mxu0 0.0
        %557 = vmatpush1.msra.mxu0 0.0
        %558 = vmatprep.subr.mxu0 0.0
        %559 = vmatpush1.msra.mxu0 0.0
        %560 = vmatprep.subr.mxu0 0.0
        %561 = vmatpush1.msra.mxu0 0.0
        %562 = vmatprep.subr.mxu0 0.0
        %563 = vmatpush1.msra.mxu0 0.0
        %564 = vmatprep.subr.mxu0 0.0
        %565 = vmatpush1.msra.mxu0 0.0
        %566 = vmatprep.subr.mxu0 0.0
        %567 = vmatpush1.msra.mxu0 0.0
        %568 = vmatprep.subr.mxu0 0.0
        %569 = vmatpush1.msra.mxu0 0.0
        %570 = vmatprep.subr.mxu0 0.0
        %571 = vmatpush1.msra.mxu0 0.0
        %572 = vmatprep.subr.mxu0 0.0
        %573 = vmatpush1.msra.mxu0 0.0
        %574 = vmatprep.subr.mxu0 0.0
        %575 = vmatpush1.msra.mxu0 0.0
        %576 = vmatprep.subr.mxu0 0.0
        %577 = vmatpush1.msra.mxu0 0.0
        %578 = vmatprep.subr.mxu0 0.0
        %579 = vmatpush1.msra.mxu0 0.0
        %580 = vmatprep.subr.mxu0 0.0
        %581 = vmatpush1.msra.mxu0 0.0
        %582 = vmatprep.subr.mxu0 0.0
        %583 = vmatpush1.msra.mxu0 0.0
        %584 = vmatprep.subr.mxu0 0.0
        %585 = vmatpush1.msra.mxu0 0.0
        %586 = vmatprep.subr.mxu0 0.0
        %587 = vmatpush1.msra.mxu0 0.0
        %588 = vmatprep.subr.mxu0 0.0
        %589 = vmatpush1.msra.mxu0 0.0
        %590 = vmatprep.subr.mxu0 0.0
        %591 = vmatpush1.msra.mxu0 0.0
        %592 = vmatprep.subr.mxu0 0.0
        %593 = vmatpush1.msra.mxu0 0.0
        %594 = vmatprep.subr.mxu0 0.0
        %595 = vmatpush1.msra.mxu0 0.0
        %596 = vmatprep.mubr.f32.mxu0 0.0
        %597 = vmatmul.mubr.f32.gmra.mrb[0].mxu0 %v530
        %v598 = vpop.f32.mrb[0].mxu0
        %v599 = vadd.f32 %v527, %v598
        %v600 = vpop.f32.mrb[0].mxu0
        %601 = vdwg.mxu0
        %v602 = vxor.u32 %v599, 2147483648
        %v603 = vmul.f32 %v602, 1.442695
        %v604 = vpow.pop %v603
        %v605 = vadd.f32 %v604, 1.0
        %v606 = vrcp.pop %v605
        %v607 = vmul.f32 1.0, %v606
        %608 = vst [vmem:[%s337] sm:$0xff] %v607
        %p609 = scmp.lt.s32.totalorder %s23, 1
        %s610 = scalar_select %p609, %s23, 1
        %s611 = smul.addr %s610, 8
        %s612 = scalar_lea.vmem %s7, %s611
        // Predicated region
        $region65: #{_box_head.1} parent=47 // pred_check
          %p613 = pneg %p193
        $region66: #{_box_head.1} parent=47 // pred_check_branch
          %615 = sbr.rel (%p613) target = $region68
        $region67: #{_box_head.1} parent=47 // pred_region
          _
        $region68: #{_box_head.1} parent=47 // pred_fallthru
          _
      $region48: #{_box_head.1} parent=5 // pred_fallthru
        _
      %p616 = scmp.le.s32.totalorder 2, %s18
      // Predicated region
      $region69: #{_box_head.1} parent=5 // pred_check
        %p617 = pneg %p616
      $region70: #{_box_head.1} parent=5 // pred_check_branch
        %619 = sbr.rel (%p617) target = $region72
      $region71: #{_box_head.1} parent=5 // pred_region
        %s620 = ssub.s32 %s18, 2
        // Predicated region
        $region73: #{_box_head.1} parent=71 // pred_check
          %p621 = pneg %p199
        $region74: #{_box_head.1} parent=71 // pred_check_branch
          %623 = sbr.rel (%p621) target = $region76
        $region75: #{_box_head.1} parent=71 // pred_region
          %p624 = scmp.lt.s32.totalorder %s24, 1
          %s625 = scalar_select %p624, %s24, 1
          %s626 = smul.addr %s625, 8
          %s627 = scalar_lea.vmem %s7, %s626
        $region76: #{_box_head.1} parent=71 // pred_fallthru
          _
      $region72: #{_box_head.1} parent=5 // pred_fallthru
        _
    $region6: #{_box_head.1} parent=1 // loop_footer
      %s22 = sadd.s32 1, %s18
    $region7: #{_box_head.1} parent=1 // loop_footer_branch
      %17 = sbr.rel target = $region3
    $region8: #{_box_head.1} parent=1 // loop_exit
      _
    %628 = vsyncpa [#allocation3], 1
    %s629 = scalar_lea.sflag [#allocation3], 1
    %630 = vsyncpa %s629, 1
    %631 = vsyncpa [#allocation5], 1
    %632 = vsyncpa [#allocation8], 1

</llo_original>
